<compile_context>
chip_gen: v6e
topology: v6e:2x2x1
jax: 0.10.0
libtpu: 0.0.40
codegen_flags: <defaults>
</compile_context>

<pallas_src>
import functools
from math import sqrt, tanh

import jax
import jax.numpy as jnp
from jax.experimental import pallas as pl
from jax.experimental.pallas import tpu as pltpu

MIN_NORM = 1e-15
# torch ref clamps atanh input at 1-1e-15, which rounds to exactly 1.0 in f32
# (inf risk); use the tightest f32 bound strictly below 1 instead.
ATANH_CLAMP = 1.0 - 1e-7

_TARGET_TILE_BYTES = 2 * 1024 * 1024     # per row-operand tile (HBM roofline)
_VMEM_ROW_BUDGET = 12 * 1024 * 1024      # double-buffered row tiles, total
_VMEM_LIMIT = 32 * 1024 * 1024           # safe on v5e/v6e (128 MiB) and v7x (64 MiB)


# --------------------------------------------------------------------------
# Row-tiled pallas_call helper
# --------------------------------------------------------------------------
def _choose_tm(n, row_cols, out_cols):
    """Byte-sized adaptive row tile.

    * ~2 MiB per row operand (amortizes ~0.35 µs per grid step, approaches the
      HBM roofline), capped by a 12 MiB double-buffered budget,
    * >= 2 grid steps once n >= 16 so v7x's two TensorCores both get rows,
    * multiple of 8 (sublane rule) unless it equals the full row count.
    """
    if n <= 8:
        return n
    cols = list(row_cols) + [out_cols]
    max_c, tot_c = max(cols), sum(cols)
    tm = _TARGET_TILE_BYTES // (4 * max_c)
    tm = min(tm, _VMEM_ROW_BUDGET // (2 * 4 * tot_c))
    if n >= 16:
        tm = min(tm, -(-n // 2))          # ceil(n/2): at least 2 grid steps
    tm = max(8, (tm // 8) * 8)
    return n if tm >= n else tm


def _const_spec(shape):
    nd = len(shape)
    return pl.BlockSpec(shape, lambda i, _n=nd: (0,) * _n)


def _row_call(kernel, row_args, const_args, out_cols, out_dtype=jnp.float32):
    """Row-tiled pallas_call.

    `row_args`  : (N, F) arrays tiled along rows (block index i).
    `const_args`: small weights / biases / p-vector kept VMEM-resident via
                  constant index_maps (no re-DMA per grid step).
    The row axis is marked "parallel" so megacore / v7x's two TCs split it.
    """
    n = row_args[0].shape[0]
    tm = _choose_tm(n, [a.shape[1] for a in row_args], out_cols)
    grid = (pl.cdiv(n, tm),)
    in_specs = (
        [pl.BlockSpec((tm, a.shape[1]), lambda i: (i, 0)) for a in row_args]
        + [_const_spec(a.shape) for a in const_args]
    )
    out_specs = pl.BlockSpec((tm, out_cols), lambda i: (i, 0))
    return pl.pallas_call(
        kernel,
        grid_spec=pltpu.PrefetchScalarGridSpec(
            num_scalar_prefetch=0,
            grid=grid,
            in_specs=in_specs,
            out_specs=out_specs,
        ),
        out_shape=jax.ShapeDtypeStruct((n, out_cols), out_dtype),
        compiler_params=pltpu.CompilerParams(
            dimension_semantics=("parallel",),
            vmem_limit_bytes=_VMEM_LIMIT,
        ),
    )(*row_args, *const_args)


# --------------------------------------------------------------------------
# Pallas kernels
# --------------------------------------------------------------------------
def _linear_kernel(x_ref, w_ref, b_ref, o_ref, *, apply_relu):
    y = jnp.dot(x_ref[...], w_ref[...], preferred_element_type=jnp.float32)
    y = y + b_ref[...]
    if apply_relu:
        y = jnp.maximum(y, 0.0)
    o_ref[...] = y


def pallas_linear(x, w, b, relu=False):
    return _row_call(
        functools.partial(_linear_kernel, apply_relu=relu),
        [x], [w, b.reshape(1, -1)], w.shape[1],
    )


def _gin_mlp_kernel(x_ref, agg_ref, w1_ref, b1_ref, w2_ref, b2_ref, o_ref):
    # GINConv (eps=0) aggregation add fused in; eval-mode BatchNorm folded
    # into w2/b2 at init.  Sequential(Linear, ReLU, BN, Linear, ReLU).
    h = x_ref[...] + agg_ref[...]
    h = jnp.dot(h, w1_ref[...], preferred_element_type=jnp.float32) + b1_ref[...]
    h = jnp.maximum(h, 0.0)
    h = jnp.dot(h, w2_ref[...], preferred_element_type=jnp.float32) + b2_ref[...]
    o_ref[...] = jnp.maximum(h, 0.0)


def _norm_scale_kernel(u_ref, o_ref, *, scaling):
    # scaling * u / ||u||  — no clamp (matches torch reference; an all-zero
    # row would NaN in the reference too).
    u = u_ref[...]
    n = jnp.sqrt(jnp.sum(u * u, axis=-1, keepdims=True))
    o_ref[...] = scaling * u / n


def _reflect_at_zero(x, mu):
    # reflect_at_zero(x, mu) = isometric_transform(x, reflection_center(mu))
    a = mu / jnp.maximum(jnp.sum(mu * mu, axis=-1, keepdims=True), MIN_NORM)
    r2 = jnp.sum(a * a, axis=-1, keepdims=True) - 1.0
    u = x - a
    return r2 / jnp.maximum(jnp.sum(u * u, axis=-1, keepdims=True), MIN_NORM) * u + a


def _logmap0(y):
    yn = jnp.maximum(jnp.sqrt(jnp.sum(y * y, axis=-1, keepdims=True)), MIN_NORM)
    t = jnp.minimum(yn, ATANH_CLAMP)                 # yn >= 0 > -1+1e-15
    atanh = 0.5 * jnp.log((1.0 + t) / (1.0 - t))
    return y / yn * atanh


def _logmap0_kernel(y_ref, o_ref):
    o_ref[...] = _logmap0(y_ref[...])


def _reflect_fused_kernel(zp_ref, zc_ref, ux_ref, p_ref, o_ref, *,
                          scaling, apply_logmap):
    """Fused: z_children = scaling*normalize(uniq_x); the three hyperbolic
    reflections of the reference forward; optionally logmap0 (last layer)."""
    z_parent = zp_ref[...]
    z_current = zc_ref[...]
    ux = ux_ref[...]
    p_vec = p_ref[...]                               # (1, H)

    # z_children = scaling * uniq_x / ||uniq_x||  (no clamp, as in torch)
    z_children = scaling * ux / jnp.sqrt(jnp.sum(ux * ux, axis=-1, keepdims=True))

    # z_parent = reflect_at_zero(z_parent, z_current)
    z_parent = _reflect_at_zero(z_parent, z_current)

    # z_children = reflect_through_zero(z_parent, p_vec, z_children)
    p_n = z_parent / jnp.maximum(
        jnp.sqrt(jnp.sum(z_parent * z_parent, axis=-1, keepdims=True)), MIN_NORM)
    q_n = p_vec / jnp.maximum(
        jnp.sqrt(jnp.sum(p_vec * p_vec, axis=-1, keepdims=True)), MIN_NORM)
    r = q_n - p_n
    m = jnp.sum(r * z_children, axis=-1, keepdims=True) / jnp.sum(
        r * r, axis=-1, keepdims=True)               # no clamp (as in torch)
    z_children = z_children - 2.0 * r * m

    # z_all = reflect_at_zero(z_children, z_current)   (+ fused logmap0)
    z_all = _reflect_at_zero(z_children, z_current)
    if apply_logmap:
        z_all = _logmap0(z_all)
    o_ref[...] = z_all


def _classifier_kernel(x_ref, w1_ref, b1_ref, w2_ref, b2_ref, w3_ref, b3_ref, o_ref):
    # relu(fc1) -> relu(fc2) -> fc3 -> log_softmax, fused in one launch.
    h = jnp.dot(x_ref[...], w1_ref[...], preferred_element_type=jnp.float32) + b1_ref[...]
    h = jnp.maximum(h, 0.0)
    h = jnp.dot(h, w2_ref[...], preferred_element_type=jnp.float32) + b2_ref[...]
    h = jnp.maximum(h, 0.0)
    h = jnp.dot(h, w3_ref[...], preferred_element_type=jnp.float32) + b3_ref[...]
    mx = jnp.max(h, axis=-1, keepdims=True)
    lse = jnp.log(jnp.sum(jnp.exp(h - mx), axis=-1, keepdims=True)) + mx
    o_ref[...] = h - lse


# --------------------------------------------------------------------------
# Parameter initialisation (deterministic, synthetic)
# --------------------------------------------------------------------------
def _init_linear(key, din, dout):
    kw, kb = jax.random.split(key)
    w = jax.random.normal(kw, (din, dout), jnp.float32) / sqrt(din)
    b = 0.01 * jax.random.normal(kb, (dout,), jnp.float32)
    return w, b


def init_params(key, input_dim, hidden_dim, n_layers, n_classes, tau):
    keys = jax.random.split(key, 4 + 2 * n_layers)
    params = {
        "scaling": float(tanh(tau / 2.0)),
        "p": (-1.0 / sqrt(hidden_dim)) * jnp.ones((1, hidden_dim), jnp.float32),
    }
    params["fc0_w"], params["fc0_b"] = _init_linear(keys[0], input_dim, hidden_dim)

    # BatchNorm1d eval mode with fresh stats: gamma=1, beta=0, mean=0, var=1.
    bn_eps = 1e-5
    gamma = jnp.ones((hidden_dim,), jnp.float32)
    beta = jnp.zeros((hidden_dim,), jnp.float32)
    r_mean = jnp.zeros((hidden_dim,), jnp.float32)
    r_var = jnp.ones((hidden_dim,), jnp.float32)
    bn_s = gamma / jnp.sqrt(r_var + bn_eps)
    bn_t = beta - r_mean * bn_s

    gin = []
    for i in range(n_layers):
        w1, b1 = _init_linear(keys[1 + 2 * i], hidden_dim, hidden_dim)
        w2, b2 = _init_linear(keys[2 + 2 * i], hidden_dim, hidden_dim)
        gin.append({
            "w1": w1, "b1": b1,
            # exact fold of the eval-mode BN affine into the second Linear
            "w2f": bn_s[:, None] * w2,
            "b2f": bn_t @ w2 + b2,
        })
    params["gin"] = gin
    params["fc1_w"], params["fc1_b"] = _init_linear(keys[1 + 2 * n_layers], hidden_dim, 128)
    params["fc2_w"], params["fc2_b"] = _init_linear(keys[2 + 2 * n_layers], 128, 64)
    params["fc3_w"], params["fc3_b"] = _init_linear(keys[3 + 2 * n_layers], 64, n_classes)
    return params


# --------------------------------------------------------------------------
# WLHN forward (classifier == "logmap", eval mode)
# --------------------------------------------------------------------------
def wlhn_forward(params, x, edge_index, batch, num_graphs):
    n_layers = len(params["gin"])
    scaling = params["scaling"]
    p_vec = params["p"]

    # fc0 + ReLU (row-tiled Pallas matmul)
    x = pallas_linear(x, params["fc0_w"], params["fc0_b"], relu=True)
    N, H = x.shape

    xs = [x]
    z = [jnp.zeros((1, H), jnp.float32)]
    inv = [jnp.zeros((N,), jnp.int32)]

    # TODO(synk): jnp.unique / concatenate / segment_sum bookkeeping has
    # data-dependent output shapes (blocks jit, dominates wall time) — kept in
    # plain JAX.  A Pallas row-hash (concat row · fixed random vector) feeding
    # a 1-D unique would be the next step, at a hash-collision risk.
    uniq, inv_all = jnp.unique(x, axis=0, return_inverse=True)
    inv_all = inv_all.reshape(-1).astype(jnp.int32)
    z.append(_row_call(
        functools.partial(_norm_scale_kernel, scaling=scaling), [uniq], [], H))
    inv.append(inv_all)

    src, dst = edge_index[0], edge_index[1]
    xl = None

    for i in range(n_layers):
        gp = params["gin"][i]
        # GINConv aggregation (eps = 0): sum over incoming edges (JAX glue);
        # the `x +` add is fused into the Pallas GIN-MLP kernel below.
        agg = jax.ops.segment_sum(x[src], dst, num_segments=N)
        x = _row_call(
            _gin_mlp_kernel, [x, agg],
            [gp["w1"], gp["b1"].reshape(1, -1), gp["w2f"], gp["b2f"].reshape(1, -1)],
            H,
        )
        xs.append(x)

        cat = jnp.concatenate(xs, axis=1)
        uniq_all, inv_all, count_all = jnp.unique(
            cat, axis=0, return_inverse=True, return_counts=True)
        inv_all = inv_all.reshape(-1).astype(jnp.int32)
        U = uniq_all.shape[0]
        uniq_x = uniq_all[:, -H:]

        t1 = jax.ops.segment_sum(inv[i + 1], inv_all, num_segments=U) // count_all
        z_current = z[i + 1][t1]
        t0 = jax.ops.segment_sum(inv[i], inv_all, num_segments=U) // count_all
        z_parent = z[i][t0]

        # Fused norm_scale + hyperbolic reflections (+ logmap0 on last layer)
        is_last = i == n_layers - 1
        res = _row_call(
            functools.partial(_reflect_fused_kernel, scaling=scaling,
                              apply_logmap=is_last),
            [z_parent, z_current, uniq_x], [p_vec], H,
        )

        inv.append(inv_all)
        if is_last:
            xl = res                    # logmap0 fused; z[-1] never round-trips
        else:
            z.append(res)

    if xl is None:                      # n_layers == 0 fallback
        xl = _row_call(_logmap0_kernel, [z[-1]], [], H)

    xl = xl[inv[-1]]
    out = jax.ops.segment_sum(xl, batch, num_segments=num_graphs)

    # classifier == "logmap"; Dropout identity in eval mode.
    # fc1 -> relu -> fc2 -> relu -> fc3 -> log_softmax fused in one launch.
    out = _row_call(
        _classifier_kernel, [out],
        [params["fc1_w"], params["fc1_b"].reshape(1, -1),
         params["fc2_w"], params["fc2_b"].reshape(1, -1),
         params["fc3_w"], params["fc3_b"].reshape(1, -1)],
        params["fc3_w"].shape[1],
    )
    return out


# --------------------------------------------------------------------------
# Demo
# --------------------------------------------------------------------------
if __name__ == "__main__":
    input_dim, hidden_dim, n_layers, tau, n_classes = 8, 32, 2, 1.0, 3
    num_graphs, nodes_per_graph = 2, 8
    N = num_graphs * nodes_per_graph

    key = jax.random.PRNGKey(0)
    k_param, k_x = jax.random.split(key)
    params = init_params(k_param, input_dim, hidden_dim, n_layers, n_classes, tau)

    # node features
    x = jax.random.normal(k_x, (N, input_dim), jnp.float32)

    # per-graph directed ring edges (both directions)
    src, dst = [], []
    for g in range(num_graphs):
        base = g * nodes_per_graph
        for i in range(nodes_per_graph):
            a, b = base + i, base + (i + 1) % nodes_per_graph
            src += [a, b]
            dst += [b, a]
    edge_index = jnp.array([src, dst], dtype=jnp.int32)
    batch = jnp.repeat(jnp.arange(num_graphs, dtype=jnp.int32), nodes_per_graph)

    out = wlhn_forward(params, x, edge_index, batch, num_graphs)
    out = jax.block_until_ready(out)
    assert out.shape == (num_graphs, n_classes)
    assert bool(jnp.all(jnp.isfinite(out)))
    print("KERNEL_OK")
</pallas_src>

<mosaic_0001>
module attributes {stable_mosaic.version = 11 : i64} {
  func.func @_linear_kernel(%arg0: i32, %arg1: memref<8x8xf32, #tpu.memory_space<vmem>>, %arg2: memref<8x32xf32, #tpu.memory_space<vmem>>, %arg3: memref<1x32xf32, #tpu.memory_space<vmem>>, %arg4: memref<8x32xf32, #tpu.memory_space<vmem>>) attributes {dimension_semantics = [#tpu.dimension_semantics<parallel>], iteration_bounds = array<i64: 2>, scalar_prefetch = 0 : i64, scratch_operands = 0 : i64, tpu.core_type = #tpu.core_type<tc>, window_params = [{transform_indices = @transform_0, window_bounds = array<i64: 8, 8>}, {pipeline_mode = #tpu.pipeline_mode<synchronous>, transform_indices = @transform_1, window_bounds = array<i64: 8, 32>}, {pipeline_mode = #tpu.pipeline_mode<synchronous>, transform_indices = @transform_2, window_bounds = array<i64: 1, 32>}, {transform_indices = @transform_3, window_bounds = array<i64: 8, 32>}]} {
    %c0 = arith.constant 0 : index
    %c0_0 = arith.constant 0 : index
    %0 = vector.load %arg1[%c0, %c0_0] : memref<8x8xf32, #tpu.memory_space<vmem>>, vector<8x8xf32>
    %c0_1 = arith.constant 0 : index
    %c0_2 = arith.constant 0 : index
    %1 = vector.load %arg2[%c0_1, %c0_2] : memref<8x32xf32, #tpu.memory_space<vmem>>, vector<8x32xf32>
    %cst = arith.constant dense<0.000000e+00> : vector<8x32xf32>
    %2 = tpu.matmul %0, %1, %cst {dimension_numbers = #tpu.dot_dimension_numbers<[1], [0], [0], [1], [0, 0, 1, 1], [], []>} : vector<8x8xf32>, vector<8x32xf32>, vector<8x32xf32> -> vector<8x32xf32>
    %c0_3 = arith.constant 0 : index
    %c0_4 = arith.constant 0 : index
    %3 = vector.load %arg3[%c0_3, %c0_4] : memref<1x32xf32, #tpu.memory_space<vmem>>, vector<1x32xf32>
    %4 = vector.broadcast %3 : vector<1x32xf32> to vector<8x32xf32>
    %5 = arith.addf %2, %4 : vector<8x32xf32>
    %cst_5 = arith.constant 0.000000e+00 : f32
    %6 = vector.broadcast %cst_5 : f32 to vector<8x32xf32>
    %7 = arith.maximumf %5, %6 : vector<8x32xf32>
    %c0_6 = arith.constant 0 : index
    %c0_7 = arith.constant 0 : index
    %8 = vector.load %arg4[%c0_6, %c0_7] : memref<8x32xf32, #tpu.memory_space<vmem>>, vector<8x32xf32>
    tpu.vector_store %arg4[%c0_6, %c0_7], %7 {strides = array<i32>} : memref<8x32xf32, #tpu.memory_space<vmem>>, vector<8x32xf32>,
    return
  }
  func.func @transform_0(%arg0: i32) -> (i32, i32) {
    %c0_i32 = arith.constant 0 : i32
    %c0_i32_0 = arith.constant 0 : i32
    return %arg0, %c0_i32 : i32, i32
  }
  func.func @transform_1(%arg0: i32) -> (i32, i32) {
    %c0_i32 = arith.constant 0 : i32
    %c0_i32_0 = arith.constant 0 : i32
    %c0_i32_1 = arith.constant 0 : i32
    return %c0_i32, %c0_i32_0 : i32, i32
  }
  func.func @transform_2(%arg0: i32) -> (i32, i32) {
    %c0_i32 = arith.constant 0 : i32
    %c0_i32_0 = arith.constant 0 : i32
    %c0_i32_1 = arith.constant 0 : i32
    return %c0_i32, %c0_i32_0 : i32, i32
  }
  func.func @transform_3(%arg0: i32) -> (i32, i32) {
    %c0_i32 = arith.constant 0 : i32
    %c0_i32_0 = arith.constant 0 : i32
    return %arg0, %c0_i32 : i32, i32
  }
}

</mosaic_0001>

<llo_original>
// kernel: tpu_custom_call.1
$region0: #{tpu_custom_call.1}
  #allocation0 [shape = 'u32[]', space=smem, size = 0x4, offset = 0x4, fixed_abs, tag = 'smem constant byte address 0x4 - core index']
  #allocation1 [shape = 'u32[144,128]{1,0:T(1,128)}', space=vmem, size = 0x12000, scoped, tag = 'internal scratch']
  %s0 = inlined_call_operand.vmem [shape: f32[16,8], index: 0, kind: input, shape index: {}]
  %s1 = inlined_call_operand.vmem [shape: f32[8,32], index: 1, kind: input, shape index: {}]
  %s2 = inlined_call_operand.vmem [shape: f32[1,32], index: 2, kind: input, shape index: {}]
  %s3 = inlined_call_operand.hbm [shape: f32[16,32], index: 3, kind: output, shape index: {}]
  %s4 = sld [smem:[#allocation0]]
  $region45: #{tpu_custom_call.1} parent=0
    _
  %s6 = ssub.s32 1, %s4
  %s7 = scalar_select 0, %s6, %s4
  $region1: #{tpu_custom_call.1} parent=0
    #allocation2 [shape = 'u8[8192]{0}', space=vmem, size = 0x2000, scoped, tag = 'output window, operand 0']
    #allocation3 [shape = 's32[2]{0}', space=sflag, size = 0x8, scoped, tag = 'scoped memory for tpu_custom_call.1']
    %8 = vsyncpa [#allocation3], 0
    %s9 = scalar_lea.sflag [#allocation3], 1
    %10 = vsyncpa %s9, 0
    loop: start=0, step=1, limit=4
    $region2: #{tpu_custom_call.1} parent=1 // loop_pre_header
      _
    $region3: #{tpu_custom_call.1} parent=1 // loop_header
      %s12 = sphi 0, %s16
      %p13 = scmp.ge.s32.totalorder %s12, 4
      %s22 = sphi 0, %s24
      %s25 = sphi 0, %s22
      %s26 = sphi 0, %s25
      %s42 = sphi 0, %s26
      %s46 = sphi 0, %s46
      %s48 = sphi 0, %s46
      %s49 = sphi 0, %s48
      %s63 = sphi 0, %s49
      %s67 = sphi 0, %s67
      %s69 = sphi 0, %s67
      %s70 = sphi 0, %s69
      %s84 = sphi 0, %s70
      %s90 = sphi 0, %s92
      %s93 = sphi 0, %s90
      %s94 = sphi 0, %s93
      %s110 = sphi 0, %s94
    $region4: #{tpu_custom_call.1} parent=1 // loop_header_branch
      %15 = sbr.rel (%p13) target = $region8
    $region5: #{tpu_custom_call.1} parent=1 // loop_body
      %s17 = ssub.s32 %s12, 1
      %s18 = ssub.s32 %s12, 2
      %s19 = sadd.s32 %s12, 1
      %s20 = ssub.s32 %s12, %s19
      %p21 = scmp.eq.s32.totalorder %s20, 0
      %s23 = sadd.s32 %s22, 1
      %s24 = scalar_select %p21, %s22, %s23
      %p27 = pneg %p21
      %p28 = scmp.eq.s32.totalorder %s12, 1
      %p29 = por %p27, %p28
      %p30 = scmp.ne.s32.totalorder %s22, %s25
      %p31 = scmp.eq.s32.totalorder %s12, 0
      %p32 = por %p30, %p31
      %p33 = scmp.ne.s32.totalorder %s22, %s25
      %p34 = scmp.eq.s32.totalorder %s17, 1
      %p35 = por %p33, %p34
      %p36 = scmp.ne.s32.totalorder %s25, %s26
      %p37 = scmp.eq.s32.totalorder %s17, 0
      %p38 = por %p36, %p37
      %p39 = scmp.ne.s32.totalorder %s25, %s26
      %p40 = scmp.eq.s32.totalorder %s18, 1
      %p41 = por %p39, %p40
      %p43 = scmp.ne.s32.totalorder %s26, %s42
      %p44 = scmp.eq.s32.totalorder %s18, 0
      %p45 = por %p43, %p44
      %s47 = sadd.s32 %s46, 1
      %p50 = scmp.eq.s32.totalorder %s12, 1
      %p51 = scmp.ne.s32.totalorder %s46, %s48
      %p52 = scmp.eq.s32.totalorder %s12, 0
      %p53 = por %p51, %p52
      %p54 = scmp.ne.s32.totalorder %s46, %s48
      %p55 = scmp.eq.s32.totalorder %s17, 1
      %p56 = por %p54, %p55
      %p57 = scmp.ne.s32.totalorder %s48, %s49
      %p58 = scmp.eq.s32.totalorder %s17, 0
      %p59 = por %p57, %p58
      %p60 = scmp.ne.s32.totalorder %s48, %s49
      %p61 = scmp.eq.s32.totalorder %s18, 1
      %p62 = por %p60, %p61
      %p64 = scmp.ne.s32.totalorder %s49, %s63
      %p65 = scmp.eq.s32.totalorder %s18, 0
      %p66 = por %p64, %p65
      %s68 = sadd.s32 %s67, 1
      %p71 = scmp.eq.s32.totalorder %s12, 1
      %p72 = scmp.ne.s32.totalorder %s67, %s69
      %p73 = scmp.eq.s32.totalorder %s12, 0
      %p74 = por %p72, %p73
      %p75 = scmp.ne.s32.totalorder %s67, %s69
      %p76 = scmp.eq.s32.totalorder %s17, 1
      %p77 = por %p75, %p76
      %p78 = scmp.ne.s32.totalorder %s69, %s70
      %p79 = scmp.eq.s32.totalorder %s17, 0
      %p80 = por %p78, %p79
      %p81 = scmp.ne.s32.totalorder %s69, %s70
      %p82 = scmp.eq.s32.totalorder %s18, 1
      %p83 = por %p81, %p82
      %p85 = scmp.ne.s32.totalorder %s70, %s84
      %p86 = scmp.eq.s32.totalorder %s18, 0
      %p87 = por %p85, %p86
      %s88 = ssub.s32 %s12, %s19
      %p89 = scmp.eq.s32.totalorder %s88, 0
      %s91 = sadd.s32 %s90, 1
      %s92 = scalar_select %p89, %s90, %s91
      %p95 = pneg %p89
      %p96 = scmp.eq.s32.totalorder %s12, 1
      %p97 = por %p95, %p96
      %p98 = scmp.ne.s32.totalorder %s90, %s93
      %p99 = scmp.eq.s32.totalorder %s12, 0
      %p100 = por %p98, %p99
      %p101 = scmp.ne.s32.totalorder %s90, %s93
      %p102 = scmp.eq.s32.totalorder %s17, 1
      %p103 = por %p101, %p102
      %p104 = scmp.ne.s32.totalorder %s93, %s94
      %p105 = scmp.eq.s32.totalorder %s17, 0
      %p106 = por %p104, %p105
      %p107 = scmp.ne.s32.totalorder %s93, %s94
      %p108 = scmp.eq.s32.totalorder %s18, 1
      %p109 = por %p107, %p108
      %p111 = scmp.ne.s32.totalorder %s94, %s110
      %p112 = scmp.eq.s32.totalorder %s18, 0
      %p113 = por %p111, %p112
      %p114 = scmp.le.s32.totalorder 1, %s12
      %p115 = scmp.lt.s32.totalorder %s12, 3
      %p116 = pnand %p114, %p115
      %p117 = pneg %p116
      // Predicated region
      $region9: #{tpu_custom_call.1} parent=5 // pred_check
        _
      $region10: #{tpu_custom_call.1} parent=5 // pred_check_branch
        %119 = sbr.rel (%p116) target = $region12
      $region11: #{tpu_custom_call.1} parent=5 // pred_region
        %s120 = ssub.s32 %s12, 1
        // Predicated region
        $region13: #{tpu_custom_call.1} parent=11 // pred_check
          %p121 = pneg %p59
        $region14: #{tpu_custom_call.1} parent=11 // pred_check_branch
          %123 = sbr.rel (%p121) target = $region16
        $region15: #{tpu_custom_call.1} parent=11 // pred_region
          _
        $region16: #{tpu_custom_call.1} parent=11 // pred_fallthru
          _
        // Predicated region
        $region17: #{tpu_custom_call.1} parent=11 // pred_check
          %p124 = pneg %p80
        $region18: #{tpu_custom_call.1} parent=11 // pred_check_branch
          %126 = sbr.rel (%p124) target = $region20
        $region19: #{tpu_custom_call.1} parent=11 // pred_region
          _
        $region20: #{tpu_custom_call.1} parent=11 // pred_fallthru
          _
      $region12: #{tpu_custom_call.1} parent=5 // pred_fallthru
        _
      %p127 = scmp.lt.s32.totalorder %s12, 2
      // Predicated region
      $region21: #{tpu_custom_call.1} parent=5 // pred_check
        %p128 = pneg %p127
      $region22: #{tpu_custom_call.1} parent=5 // pred_check_branch
        %130 = sbr.rel (%p128) target = $region24
      $region23: #{tpu_custom_call.1} parent=5 // pred_region
        // Predicated region
        $region25: #{tpu_custom_call.1} parent=23 // pred_check
          %p131 = pneg %p32
        $region26: #{tpu_custom_call.1} parent=23 // pred_check_branch
          %133 = sbr.rel (%p131) target = $region28
        $region27: #{tpu_custom_call.1} parent=23 // pred_region
          %p134 = scmp.lt.s32.totalorder %s12, 1
          %s135 = scalar_select %p134, %s12, 1
          %s136 = smul.addr %s135, 8
          %s137 = scalar_lea.vmem %s0, %s136
        $region28: #{tpu_custom_call.1} parent=23 // pred_fallthru
          _
      $region24: #{tpu_custom_call.1} parent=5 // pred_fallthru
        _
      %p138 = scmp.le.s32.totalorder 1, %s12
      %p139 = scmp.lt.s32.totalorder %s12, 3
      %p140 = pnand %p138, %p139
      %p141 = pneg %p140
      // Predicated region
      $region29: #{tpu_custom_call.1} parent=5 // pred_check
        _
      $region30: #{tpu_custom_call.1} parent=5 // pred_check_branch
        %143 = sbr.rel (%p140) target = $region32
      $region31: #{tpu_custom_call.1} parent=5 // pred_region
        %s144 = ssub.s32 %s12, 1
        %p145 = scmp.lt.s32.totalorder %s17, 1
        %s146 = scalar_select %p145, %s17, 1
        %s147 = smul.addr %s146, 8
        %s148 = scalar_lea.vmem %s0, %s147
        %p149 = pneg %p38
        %p150 = pneg %p35
        %p151 = pneg %p59
        %p152 = pneg %p56
        %p153 = pneg %p80
        %p154 = pneg %p77
        %p155 = pneg %p106
        %p156 = pneg %p103
        %s157 = sand.u32 %s93, 1
        %s158 = scalar_lea.sflag [#allocation3], %s157
        %s159 = sand.u32 %s93, 1
        %s160 = smul.addr %s159, 8
        %s161 = scalar_lea.vmem [#allocation2], %s160
        %p162 = scmp.lt.s32.totalorder %s17, 1
        %s163 = scalar_select %p162, %s17, 1
        %s164 = smul.addr %s163, 8
        %s165 = scalar_lea.vmem %s0, %s164
        %v166 = vld [vmem:[%s165] sm:$0xff]
        %v167 = vld [vmem:[%s1] sm:$0xff]
        %v168 = vld [vmem:[%s2] sm:$0x1]
        %v170 = vlaneseq
        %v171 = vshrl.u32 %v170, 7
        %v172 = vsub.s32 0, %v171
        %v173 = vrot.slane %v168, %v172
        %vm175 = vcmask 64512
        %v177 = vsel %vm175, %v166, 0
        %179 = vmatprep.subr.mxu0 0.0
        %180 = vmatpush1.msra.mxu0 0.0
        %181 = vmatprep.subr.mxu0 0.0
        %182 = vmatpush1.msra.mxu0 0.0
        %183 = vmatprep.subr.mxu0 0.0
        %184 = vmatpush1.msra.mxu0 0.0
        %185 = vmatprep.subr.mxu0 0.0
        %186 = vmatpush1.msra.mxu0 0.0
        %187 = vmatprep.subr.mxu0 0.0
        %188 = vmatpush1.msra.mxu0 0.0
        %189 = vmatprep.subr.mxu0 0.0
        %190 = vmatpush1.msra.mxu0 0.0
        %191 = vmatprep.subr.mxu0 0.0
        %192 = vmatpush1.msra.mxu0 0.0
        %193 = vmatprep.subr.mxu0 0.0
        %194 = vmatpush1.msra.mxu0 0.0
        %195 = vmatprep.subr.mxu0 0.0
        %196 = vmatpush1.msra.mxu0 0.0
        %197 = vmatprep.subr.mxu0 0.0
        %198 = vmatpush1.msra.mxu0 0.0
        %199 = vmatprep.subr.mxu0 0.0
        %200 = vmatpush1.msra.mxu0 0.0
        %201 = vmatprep.subr.mxu0 0.0
        %202 = vmatpush1.msra.mxu0 0.0
        %203 = vmatprep.subr.mxu0 0.0
        %204 = vmatpush1.msra.mxu0 0.0
        %205 = vmatprep.subr.mxu0 0.0
        %206 = vmatpush1.msra.mxu0 0.0
        %207 = vmatprep.subr.mxu0 0.0
        %208 = vmatpush1.msra.mxu0 0.0
        %209 = vmatprep.subr.mxu0 0.0
        %210 = vmatpush1.msra.mxu0 %v167
        %211 = vmatprep.subr.mxu0 0.0
        %212 = vmatpush2.msra.mxu0 0.0
        %213 = vmatprep.subr.mxu0 0.0
        %214 = vmatpush2.msra.mxu0 0.0
        %215 = vmatprep.subr.mxu0 0.0
        %216 = vmatpush2.msra.mxu0 0.0
        %217 = vmatprep.subr.mxu0 0.0
        %218 = vmatpush2.msra.mxu0 0.0
        %219 = vmatprep.subr.mxu0 0.0
        %220 = vmatpush2.msra.mxu0 0.0
        %221 = vmatprep.subr.mxu0 0.0
        %222 = vmatpush2.msra.mxu0 0.0
        %223 = vmatprep.subr.mxu0 0.0
        %224 = vmatpush2.msra.mxu0 0.0
        %225 = vmatprep.subr.mxu0 0.0
        %226 = vmatpush2.msra.mxu0 0.0
        %227 = vmatprep.subr.mxu0 0.0
        %228 = vmatpush2.msra.mxu0 0.0
        %229 = vmatprep.subr.mxu0 0.0
        %230 = vmatpush2.msra.mxu0 0.0
        %231 = vmatprep.subr.mxu0 0.0
        %232 = vmatpush2.msra.mxu0 0.0
        %233 = vmatprep.subr.mxu0 0.0
        %234 = vmatpush2.msra.mxu0 0.0
        %235 = vmatprep.subr.mxu0 0.0
        %236 = vmatpush2.msra.mxu0 0.0
        %237 = vmatprep.subr.mxu0 0.0
        %238 = vmatpush2.msra.mxu0 0.0
        %239 = vmatprep.subr.mxu0 0.0
        %240 = vmatpush2.msra.mxu0 0.0
        %241 = vmatprep.subr.mxu0 0.0
        %242 = vmatpush2.msra.mxu0 0.0
        %243 = vmatprep.mubr.f32.mxu0 0.0
        %244 = vmatmul.mubr.f32.gmra.mxu0 %v177
        %v245 = vpop.f32.mrf.mxu0
        %v246 = vadd.f32 %v173, %v245
        %v247 = vpop.f32.mrf.mxu0
        %248 = vdwg.mxu0
        %v249 = vmax.f32 %v246, 0.0
        %vm250 = vcmask 261120
        %251 = vst.msk [vmem:[%s161] sm:$0xff] %vm250, %v249
        %s252 = sand.u32 %s93, 1
        %s253 = scalar_lea.sflag [#allocation3], %s252
        %s254 = sand.u32 %s93, 1
        %s255 = smul.addr %s254, 8
        %s256 = scalar_lea.vmem [#allocation2], %s255
        // Predicated region
        $region33: #{tpu_custom_call.1} parent=31 // pred_check
          %p257 = pneg %p103
        $region34: #{tpu_custom_call.1} parent=31 // pred_check_branch
          %259 = sbr.rel (%p257) target = $region36
        $region35: #{tpu_custom_call.1} parent=31 // pred_region
          %s261 = ssub.s32 128, 128
          %262 = vsyncadd %s253, %s261
          %s263 = smul.addr %s17, 128
          %s264 = scalar_lea.hbm %s3, %s263
          %s266 = sshll.u32 %s256, 4
          %s267 = int_to_ptr.vmem [resolvable:$true] %s266
          %269 = dma.vmem_to_hbm [thread:$0]  %s267, 128, %s264, %s253
        $region36: #{tpu_custom_call.1} parent=31 // pred_fallthru
          _
      $region32: #{tpu_custom_call.1} parent=5 // pred_fallthru
        _
      %p270 = scmp.le.s32.totalorder 2, %s12
      // Predicated region
      $region37: #{tpu_custom_call.1} parent=5 // pred_check
        %p271 = pneg %p270
      $region38: #{tpu_custom_call.1} parent=5 // pred_check_branch
        %273 = sbr.rel (%p271) target = $region40
      $region39: #{tpu_custom_call.1} parent=5 // pred_region
        %s274 = ssub.s32 %s12, 2
        // Predicated region
        $region41: #{tpu_custom_call.1} parent=39 // pred_check
          %p275 = pneg %p109
        $region42: #{tpu_custom_call.1} parent=39 // pred_check_branch
          %277 = sbr.rel (%p275) target = $region44
        $region43: #{tpu_custom_call.1} parent=39 // pred_region
          %s278 = sand.u32 %s94, 1
          %s279 = scalar_lea.sflag [#allocation3], %s278
          %s280 = sand.u32 %s94, 1
          %s281 = smul.addr %s280, 8
          %s282 = scalar_lea.vmem [#allocation2], %s281
          %283 = dma.done %s279, 128
        $region44: #{tpu_custom_call.1} parent=39 // pred_fallthru
          _
      $region40: #{tpu_custom_call.1} parent=5 // pred_fallthru
        _
    $region6: #{tpu_custom_call.1} parent=1 // loop_footer
      %s16 = sadd.s32 1, %s12
    $region7: #{tpu_custom_call.1} parent=1 // loop_footer_branch
      %11 = sbr.rel target = $region3
    $region8: #{tpu_custom_call.1} parent=1 // loop_exit
      _
    %284 = vsyncpa [#allocation3], 1
    %s285 = scalar_lea.sflag [#allocation3], 1
    %286 = vsyncpa %s285, 1

</llo_original>
